<compile_context>
chip_gen: v7x
topology: tpu7x:2x2x1
jax: 0.10.0
libtpu: 0.0.40
codegen_flags: <defaults>
</compile_context>

<pallas_src>
import jax
import jax.numpy as jnp
from jax.experimental import pallas as pl
from jax.experimental.pallas import tpu as pltpu

_MIB = 1024 * 1024


# --------------------------------------------------------------------------- #
# Kernel
# --------------------------------------------------------------------------- #
def _mixloss_kernel(x_ref, adj_ref, l_ref, y_ref, sec_ref, tr_ref):
    j = pl.program_id(1)

    @pl.when(j == 0)
    def _():
        sec_ref[...] = jnp.zeros_like(sec_ref)
        tr_ref[...] = jnp.zeros_like(tr_ref)

    tm = x_ref.shape[0]

    # ---- second-order partial: fold (tm, C) -> (8, C), VPU adds only -------
    diff = x_ref[...] - adj_ref[...]
    d2 = diff * diff
    sec_ref[...] += d2.reshape(tm // 8, 8, -1).sum(axis=0)

    # ---- first-order partial: sum over this row tile of Y * (L @ Y) --------
    # Y row tile is a view into the resident (padded) Y; power-of-two aligned.
    rb = pl.program_id(0) * pl.num_programs(1) + j
    align = 128 if tm % 128 == 0 else 8
    row0 = pl.multiple_of(rb * tm, align)
    y_blk = y_ref[pl.ds(row0, tm), :]
    ly = jnp.dot(l_ref[...], y_ref[...], preferred_element_type=jnp.float32)
    prod = y_blk * ly                       # (tm, Dp), lane-dense (Dp % 128 == 0)
    tr_ref[...] += prod.reshape(tm // 8, 8, -1).sum(axis=0)


# --------------------------------------------------------------------------- #
# Sizing helpers
# --------------------------------------------------------------------------- #
def _physical_vmem_bytes():
    try:
        return int(pltpu.get_tpu_info().vmem_capacity_bytes)
    except Exception:
        return 64 * _MIB                    # conservative fallback (v7x per-TC)


def _num_tensorcores():
    """TensorCores sharing this chip's HBM: 1 on v5e/v6e, 2 on v7x (megacore).

    Detection failures degrade to 1, which is correct everywhere (the leading
    grid axis simply isn't sharded)."""
    try:
        info = pltpu.get_tpu_info()
        for attr in ("num_cores", "core_count", "num_tensorcores",
                     "tensorcore_count", "cores_per_chip"):
            v = getattr(info, attr, None)
            if isinstance(v, int) and 1 <= v <= 8:
                return v
    except Exception:
        pass
    try:
        kind = jax.devices()[0].device_kind.lower()
        if any(tag in kind for tag in ("v4", "v5p", "v7", "7x")):
            return 2
    except Exception:
        pass
    return 1


def _vmem_need_bytes(tm, N, C, Dp, nbuf):
    streamed = nbuf * tm * (2 * C + N) * 4      # X, adj, L row tiles (nbuf-deep)
    resident = N * Dp * 4                        # Y: single buffer
    slabs = 2 * 8 * (C + Dp) * 4                 # accumulator out blocks (x2 margin)
    return streamed + resident + slabs


def _choose_tiling(N, C, Dp, budget, ncores):
    cands = [t for t in range(8, N + 1, 8) if N % t == 0]
    assert cands, "N must be a positive multiple of 8"
    fitting = [t for t in cands if _vmem_need_bytes(t, N, C, Dp, nbuf=2) <= budget]
    if not fitting:
        # TODO(synk): add a Y-column-tiled path (extra grid axis over D panels,
        # or Y kept in pl.ANY with manual panel DMAs) for configs where even the
        # smallest row tile plus the VMEM-resident Y exceeds the per-core VMEM
        # (large N*D on v7x's 64 MiB). For now fail loudly instead of spilling.
        raise ValueError(
            f"MixLoss row tiling does not fit the VMEM budget ({budget} B): "
            f"resident Y alone needs {N * Dp * 4} B")
    if ncores >= 2:
        # v7x: shard row chunks across the two TensorCores; prefer tiles that
        # still leave >= 2 reduction steps per core so the DMA pipeline overlaps.
        good = [t for t in fitting if (N // t) % 2 == 0 and (N // t) >= 4]
        if good:
            return max(good), 2
        ok = [t for t in fitting if (N // t) % 2 == 0]
        if ok:
            return max(ok), 2
    # Single-core (v5e/v6e): largest fitting tile; tm == N collapses the whole
    # problem to one grid step.
    return max(fitting), 1


def _block_spec(shape, index_map, buffers=None):
    """BlockSpec with an optional pipeline depth; falls back cleanly if this
    jax version's BlockSpec has no pipeline_mode kwarg."""
    if buffers is None:
        return pl.BlockSpec(shape, index_map)
    try:
        return pl.BlockSpec(shape, index_map, pipeline_mode=pl.Buffered(buffers))
    except (TypeError, AttributeError):
        return pl.BlockSpec(shape, index_map)


# --------------------------------------------------------------------------- #
# Public entry point
# --------------------------------------------------------------------------- #
def mix_loss(X, Y, adj_matrix, L_matrix, alpha, beta):
    """Pallas implementation of MixLoss.forward(X, Y)."""
    del beta  # matrix_beta in the reference module is identically 1 (no-op mask)
    N, C = X.shape
    D = Y.shape[1]
    assert adj_matrix.shape == (N, C)
    assert L_matrix.shape == (N, N)
    assert Y.shape[0] == N
    assert N % 8 == 0, "row count must be a multiple of 8"

    # Pad Y to a 128-lane multiple: lane-dense MXU output + unmasked accumulator
    # stores.  Padded columns are zero and contribute nothing to the trace.
    Dp = max(128, ((D + 127) // 128) * 128)
    Yp = Y if Dp == D else jnp.pad(Y, ((0, 0), (0, Dp - D)))

    phys = _physical_vmem_bytes()
    ncores = _num_tensorcores()
    vmem_limit = int(phys * 0.8)                 # one number drives everything
    tile_budget = vmem_limit - 2 * _MIB          # small reserve for Mosaic scratch

    tm, P = _choose_tiling(N, C, Dp, tile_budget, ncores)
    J = (N // tm) // P

    # Deepen the streamed-input pipeline only if it fits at the chosen tm and
    # there is more than one reduction step to overlap.
    nbuf = 3 if (J >= 2 and _vmem_need_bytes(tm, N, C, Dp, nbuf=3) <= tile_budget) else 2
    stream_buf = nbuf if nbuf != 2 else None     # 2 == default double-buffer

    row_map = lambda p, j: (p * J + j, 0)

    sec_parts, tr_parts = pl.pallas_call(
        _mixloss_kernel,
        out_shape=(
            jax.ShapeDtypeStruct((P, 8, C), jnp.float32),
            jax.ShapeDtypeStruct((P, 8, Dp), jnp.float32),
        ),
        grid_spec=pltpu.PrefetchScalarGridSpec(
            num_scalar_prefetch=0,
            grid=(P, J),
            in_specs=[
                _block_spec((tm, C), row_map, stream_buf),        # X row tile
                _block_spec((tm, C), row_map, stream_buf),        # adj row tile
                _block_spec((tm, N), row_map, stream_buf),        # L row tile
                _block_spec((N, Dp), lambda p, j: (0, 0), 1),     # Y resident, 1 buf
            ],
            out_specs=[
                pl.BlockSpec((None, 8, C), lambda p, j: (p, 0, 0)),   # 2nd-order slab
                pl.BlockSpec((None, 8, Dp), lambda p, j: (p, 0, 0)),  # trace slab
            ],
        ),
        compiler_params=pltpu.CompilerParams(
            dimension_semantics=("parallel", "arbitrary"),
            vmem_limit_bytes=vmem_limit,
        ),
    )(X, adj_matrix, L_matrix, Yp)

    # Tiny final reductions + scaling in plain JAX (once, off the hot path).
    second_order = jnp.sum(sec_parts) / jnp.float32(C)
    first_order = 2.0 * jnp.float32(alpha) * jnp.sum(tr_parts)
    return first_order + second_order


def mix_loss_ref(X, Y, adj, L, alpha, beta):
    """Plain-JAX reference matching the PyTorch forward exactly."""
    mb = jnp.ones_like(adj)
    mb = jnp.where(mb == 0, jnp.float32(beta), mb)   # no-op, as in PyTorch
    second = jnp.mean(jnp.sum(((X - adj) * mb) ** 2, axis=0))
    trace = jnp.trace(Y.T @ L @ Y)
    return 2.0 * alpha * trace + second


if __name__ == "__main__":
    key = jax.random.PRNGKey(0)
    N, D = 256, 32                     # N nodes, D embedding dim
    alpha, beta = 1e-5, 5.0            # cfg.SDNE.ALPHA, cfg.SDNE.BETA

    k1, k2, k3 = jax.random.split(key, 3)
    # deterministic synthetic adjacency + graph Laplacian (as SDNE would build)
    adj = (jax.random.uniform(k1, (N, N)) < 0.1).astype(jnp.float32)
    adj = jnp.maximum(adj, adj.T)                      # symmetric adjacency
    L = jnp.diag(jnp.sum(adj, axis=1)) - adj           # L = D - A
    X = jax.random.normal(k2, (N, N), jnp.float32)     # decoder reconstruction
    Y = jax.random.normal(k3, (N, D), jnp.float32)     # encoder embeddings

    out = mix_loss(X, Y, adj, L, alpha, beta)
    out = jax.block_until_ready(out)

    ref = mix_loss_ref(X, Y, adj, L, alpha, beta)
    assert jnp.allclose(out, ref, rtol=1e-4, atol=1e-3), (out, ref)
    print("KERNEL_OK")
</pallas_src>

<mosaic_0001>
module attributes {stable_mosaic.version = 11 : i64} {
  func.func @_mixloss_kernel(%arg0: i32, %arg1: i32, %arg2: memref<256x256xf32, #tpu.memory_space<vmem>>, %arg3: memref<256x256xf32, #tpu.memory_space<vmem>>, %arg4: memref<256x256xf32, #tpu.memory_space<vmem>>, %arg5: memref<256x128xf32, #tpu.memory_space<vmem>>, %arg6: memref<1x8x256xf32, #tpu.memory_space<vmem>>, %arg7: memref<1x8x128xf32, #tpu.memory_space<vmem>>) attributes {dimension_semantics = [#tpu.dimension_semantics<parallel>, #tpu.dimension_semantics<arbitrary>], iteration_bounds = array<i64: 1, 1>, scalar_prefetch = 0 : i64, scratch_operands = 0 : i64, tpu.core_type = #tpu.core_type<tc>, window_params = [{transform_indices = @transform_0, window_bounds = array<i64: 256, 256>}, {transform_indices = @transform_1, window_bounds = array<i64: 256, 256>}, {transform_indices = @transform_2, window_bounds = array<i64: 256, 256>}, {pipeline_mode = #tpu.pipeline_mode<synchronous>, transform_indices = @transform_3, window_bounds = array<i64: 256, 128>}, {transform_indices = @transform_4, window_bounds = array<i64: 1, 8, 256>}, {transform_indices = @transform_5, window_bounds = array<i64: 1, 8, 128>}]} {
    %c0_i32 = arith.constant 0 : i32
    %0 = arith.cmpi eq, %arg1, %c0_i32 : i32
    %1 = arith.extui %0 : i1 to i32
    %c0_i32_0 = arith.constant 0 : i32
    %2 = arith.cmpi ne, %1, %c0_i32_0 : i32
    scf.if %2 {
      %cst_23 = arith.constant 0.000000e+00 : f32
      %33 = vector.broadcast %cst_23 : f32 to vector<8x256xf32>
      %c0_24 = arith.constant 0 : index
      %c0_25 = arith.constant 0 : index
      %c0_26 = arith.constant 0 : index
      %34 = vector.load %arg6[%c0_24, %c0_25, %c0_26] : memref<1x8x256xf32, #tpu.memory_space<vmem>>, vector<1x8x256xf32>
      %35 = vector.shape_cast %34 : vector<1x8x256xf32> to vector<8x256xf32>
      %36 = vector.shape_cast %33 : vector<8x256xf32> to vector<1x8x256xf32>
      tpu.vector_store %arg6[%c0_24, %c0_25, %c0_26], %36 {strides = array<i32>} : memref<1x8x256xf32, #tpu.memory_space<vmem>>, vector<1x8x256xf32>,
      %cst_27 = arith.constant 0.000000e+00 : f32
      %37 = vector.broadcast %cst_27 : f32 to vector<8x128xf32>
      %c0_28 = arith.constant 0 : index
      %c0_29 = arith.constant 0 : index
      %c0_30 = arith.constant 0 : index
      %38 = vector.load %arg7[%c0_28, %c0_29, %c0_30] : memref<1x8x128xf32, #tpu.memory_space<vmem>>, vector<1x8x128xf32>
      %39 = vector.shape_cast %38 : vector<1x8x128xf32> to vector<8x128xf32>
      %40 = vector.shape_cast %37 : vector<8x128xf32> to vector<1x8x128xf32>
      tpu.vector_store %arg7[%c0_28, %c0_29, %c0_30], %40 {strides = array<i32>} : memref<1x8x128xf32, #tpu.memory_space<vmem>>, vector<1x8x128xf32>,
    } else {
    }
    %c0 = arith.constant 0 : index
    %c0_1 = arith.constant 0 : index
    %3 = vector.load %arg2[%c0, %c0_1] : memref<256x256xf32, #tpu.memory_space<vmem>>, vector<256x256xf32>
    %c0_2 = arith.constant 0 : index
    %c0_3 = arith.constant 0 : index
    %4 = vector.load %arg3[%c0_2, %c0_3] : memref<256x256xf32, #tpu.memory_space<vmem>>, vector<256x256xf32>
    %5 = arith.subf %3, %4 : vector<256x256xf32>
    %6 = arith.mulf %5, %5 : vector<256x256xf32>
    %c0_4 = arith.constant 0 : index
    %c0_5 = arith.constant 0 : index
    %c0_6 = arith.constant 0 : index
    %7 = vector.load %arg6[%c0_4, %c0_5, %c0_6] : memref<1x8x256xf32, #tpu.memory_space<vmem>>, vector<1x8x256xf32>
    %8 = vector.shape_cast %7 : vector<1x8x256xf32> to vector<8x256xf32>
    %9 = vector.shape_cast %6 : vector<256x256xf32> to vector<32x8x256xf32>
    %cst = arith.constant dense<0.000000e+00> : vector<8x256xf32>
    %10 = vector.multi_reduction <add>, %9, %cst [0] : vector<32x8x256xf32> to vector<8x256xf32>
    %11 = arith.addf %8, %10 : vector<8x256xf32>
    %c0_7 = arith.constant 0 : index
    %c0_8 = arith.constant 0 : index
    %c0_9 = arith.constant 0 : index
    %12 = vector.load %arg6[%c0_7, %c0_8, %c0_9] : memref<1x8x256xf32, #tpu.memory_space<vmem>>, vector<1x8x256xf32>
    %13 = vector.shape_cast %12 : vector<1x8x256xf32> to vector<8x256xf32>
    %14 = vector.shape_cast %11 : vector<8x256xf32> to vector<1x8x256xf32>
    tpu.vector_store %arg6[%c0_7, %c0_8, %c0_9], %14 {strides = array<i32>} : memref<1x8x256xf32, #tpu.memory_space<vmem>>, vector<1x8x256xf32>,
    %c1_i32 = arith.constant 1 : i32
    %15 = arith.muli %arg0, %c1_i32 : i32
    %16 = arith.addi %15, %arg1 : i32
    %c256_i32 = arith.constant 256 : i32
    %17 = arith.muli %16, %c256_i32 : i32
    %18 = tpu.assume_multiple %17, 128 : i32
    %19 = arith.index_cast %18 : i32 to index
    %c0_10 = arith.constant 0 : index
    %20 = vector.load %arg5[%19, %c0_10] : memref<256x128xf32, #tpu.memory_space<vmem>>, vector<256x128xf32>
    %c0_11 = arith.constant 0 : index
    %c0_12 = arith.constant 0 : index
    %21 = vector.load %arg4[%c0_11, %c0_12] : memref<256x256xf32, #tpu.memory_space<vmem>>, vector<256x256xf32>
    %c0_13 = arith.constant 0 : index
    %c0_14 = arith.constant 0 : index
    %22 = vector.load %arg5[%c0_13, %c0_14] : memref<256x128xf32, #tpu.memory_space<vmem>>, vector<256x128xf32>
    %cst_15 = arith.constant dense<0.000000e+00> : vector<256x128xf32>
    %23 = tpu.matmul %21, %22, %cst_15 {dimension_numbers = #tpu.dot_dimension_numbers<[1], [0], [0], [1], [0, 0, 1, 1], [], []>} : vector<256x256xf32>, vector<256x128xf32>, vector<256x128xf32> -> vector<256x128xf32>
    %24 = arith.mulf %20, %23 : vector<256x128xf32>
    %c0_16 = arith.constant 0 : index
    %c0_17 = arith.constant 0 : index
    %c0_18 = arith.constant 0 : index
    %25 = vector.load %arg7[%c0_16, %c0_17, %c0_18] : memref<1x8x128xf32, #tpu.memory_space<vmem>>, vector<1x8x128xf32>
    %26 = vector.shape_cast %25 : vector<1x8x128xf32> to vector<8x128xf32>
    %27 = vector.shape_cast %24 : vector<256x128xf32> to vector<32x8x128xf32>
    %cst_19 = arith.constant dense<0.000000e+00> : vector<8x128xf32>
    %28 = vector.multi_reduction <add>, %27, %cst_19 [0] : vector<32x8x128xf32> to vector<8x128xf32>
    %29 = arith.addf %26, %28 : vector<8x128xf32>
    %c0_20 = arith.constant 0 : index
    %c0_21 = arith.constant 0 : index
    %c0_22 = arith.constant 0 : index
    %30 = vector.load %arg7[%c0_20, %c0_21, %c0_22] : memref<1x8x128xf32, #tpu.memory_space<vmem>>, vector<1x8x128xf32>
    %31 = vector.shape_cast %30 : vector<1x8x128xf32> to vector<8x128xf32>
    %32 = vector.shape_cast %29 : vector<8x128xf32> to vector<1x8x128xf32>
    tpu.vector_store %arg7[%c0_20, %c0_21, %c0_22], %32 {strides = array<i32>} : memref<1x8x128xf32, #tpu.memory_space<vmem>>, vector<1x8x128xf32>,
    return
  }
  func.func @transform_0(%arg0: i32, %arg1: i32) -> (i32, i32) {
    %c1_i32 = arith.constant 1 : i32
    %0 = arith.muli %arg0, %c1_i32 : i32
    %1 = arith.addi %0, %arg1 : i32
    %c0_i32 = arith.constant 0 : i32
    %c0_i32_0 = arith.constant 0 : i32
    return %1, %c0_i32 : i32, i32
  }
  func.func @transform_1(%arg0: i32, %arg1: i32) -> (i32, i32) {
    %c1_i32 = arith.constant 1 : i32
    %0 = arith.muli %arg0, %c1_i32 : i32
    %1 = arith.addi %0, %arg1 : i32
    %c0_i32 = arith.constant 0 : i32
    %c0_i32_0 = arith.constant 0 : i32
    return %1, %c0_i32 : i32, i32
  }
  func.func @transform_2(%arg0: i32, %arg1: i32) -> (i32, i32) {
    %c1_i32 = arith.constant 1 : i32
    %0 = arith.muli %arg0, %c1_i32 : i32
    %1 = arith.addi %0, %arg1 : i32
    %c0_i32 = arith.constant 0 : i32
    %c0_i32_0 = arith.constant 0 : i32
    return %1, %c0_i32 : i32, i32
  }
  func.func @transform_3(%arg0: i32, %arg1: i32) -> (i32, i32) {
    %c0_i32 = arith.constant 0 : i32
    %c0_i32_0 = arith.constant 0 : i32
    %c0_i32_1 = arith.constant 0 : i32
    return %c0_i32, %c0_i32_0 : i32, i32
  }
  func.func @transform_4(%arg0: i32, %arg1: i32) -> (i32, i32, i32) {
    %c0_i32 = arith.constant 0 : i32
    %c0_i32_0 = arith.constant 0 : i32
    %c0_i32_1 = arith.constant 0 : i32
    return %arg0, %c0_i32, %c0_i32_0 : i32, i32, i32
  }
  func.func @transform_5(%arg0: i32, %arg1: i32) -> (i32, i32, i32) {
    %c0_i32 = arith.constant 0 : i32
    %c0_i32_0 = arith.constant 0 : i32
    %c0_i32_1 = arith.constant 0 : i32
    return %arg0, %c0_i32, %c0_i32_0 : i32, i32, i32
  }
}

</mosaic_0001>

<llo_original>
// kernel: tpu_custom_call.1
$region0: #{tpu_custom_call.1}
  #allocation0 [shape = 'u32[]', space=smem, size = 0x4, offset = 0x4, fixed_abs, tag = 'smem constant byte address 0x4 - core index']
  #allocation1 [shape = 'u32[144,128]{1,0:T(1,128)}', space=vmem, size = 0x12000, scoped, tag = 'internal scratch']
  %s0 = inlined_call_operand.hbm [shape: f32[256,256], index: 0, kind: input, shape index: {}]
  %s1 = inlined_call_operand.hbm [shape: f32[256,256], index: 1, kind: input, shape index: {}]
  %s2 = inlined_call_operand.hbm [shape: f32[256,256], index: 2, kind: input, shape index: {}]
  %s3 = inlined_call_operand.hbm [shape: f32[256,128], index: 3, kind: input, shape index: {}]
  %s4 = inlined_call_operand.hbm [shape: f32[1,8,256], index: 4, kind: output, shape index: {0}]
  %s5 = inlined_call_operand.hbm [shape: f32[1,8,128], index: 5, kind: output, shape index: {1}]
  %6 = xla_tuple %s4, %s5
  %s7 = sld [smem:[#allocation0]]
  $region54: #{tpu_custom_call.1} parent=0
    _
  %s9 = ssub.s32 1, %s7
  %s10 = scalar_select 0, %s9, %s7
  $region1: #{tpu_custom_call.1} parent=0
    #allocation2 [shape = 'u8[262144]{0}', space=vmem, size = 0x40000, scoped, tag = 'input window, operand 0, single buffered']
    #allocation3 [shape = 's32[1]{0}', space=sflag, size = 0x4, scoped, tag = 'scoped memory for tpu_custom_call.1']
    #allocation4 [shape = 's32[1]{0}', space=sflag, size = 0x4, scoped, tag = 'scoped memory for tpu_custom_call.1']
    #allocation5 [shape = 'u8[262144]{0}', space=vmem, size = 0x40000, scoped, tag = 'input window, operand 1, single buffered']
    #allocation6 [shape = 's32[1]{0}', space=sflag, size = 0x4, scoped, tag = 'scoped memory for tpu_custom_call.1']
    #allocation7 [shape = 'u8[262144]{0}', space=vmem, size = 0x40000, scoped, tag = 'input window, operand 2, single buffered']
    #allocation8 [shape = 'u8[131072]{0}', space=vmem, size = 0x20000, scoped, tag = 'input window, operand 3, single buffered']
    #allocation9 [shape = 's32[1]{0}', space=sflag, size = 0x4, scoped, tag = 'scoped memory for tpu_custom_call.1']
    #allocation10 [shape = 'u8[8192]{0}', space=vmem, size = 0x2000, scoped, tag = 'output window, operand 0, single buffered']
    #allocation11 [shape = 'u8[4096]{0}', space=vmem, size = 0x1000, scoped, tag = 'output window, operand 1, single buffered']
    #allocation12 [shape = 's32[1]{0}', space=sflag, size = 0x4, scoped, tag = 'scoped memory for tpu_custom_call.1']
    %11 = vsyncpa [#allocation3], 0
    %12 = vsyncpa [#allocation6], 0
    %13 = vsyncpa [#allocation9], 0
    %14 = vsyncpa [#allocation4], 0
    %15 = vsyncpa [#allocation12], 0
    // Predicated region
    $region2: #{tpu_custom_call.1} parent=1 // pred_check
      _
    $region3: #{tpu_custom_call.1} parent=1 // pred_check_branch
      %17 = sbr.rel (0) target = $region5
    $region4: #{tpu_custom_call.1} parent=1 // pred_region
      %s18 = sadd.s32 0, 0
      %s19 = smul.u32 32, %s18
      %s21 = ssub.s32 8192, 8192
      %22 = vsyncadd [#allocation3], %s21
      %s23 = smul.addr %s19, 2
      %s24 = smul.addr %s23, 128
      %s25 = scalar_lea.hbm %s0, %s24
      %s26 = sshll.u32 [#allocation2], 4
      %s27 = int_to_ptr.vmem [resolvable:$true] %s26
      %32 = dma.hbm_to_vmem [thread:$0]  %s25, 8192, %s27, [#allocation3], 256, 256, 16
    $region5: #{tpu_custom_call.1} parent=1 // pred_fallthru
      _
    // Predicated region
    $region6: #{tpu_custom_call.1} parent=1 // pred_check
      _
    $region7: #{tpu_custom_call.1} parent=1 // pred_check_branch
      %34 = sbr.rel (0) target = $region9
    $region8: #{tpu_custom_call.1} parent=1 // pred_region
      %s35 = sadd.s32 0, 0
      %s36 = smul.u32 32, %s35
      %s38 = ssub.s32 8192, 8192
      %39 = vsyncadd [#allocation6], %s38
      %s40 = smul.addr %s36, 2
      %s41 = smul.addr %s40, 128
      %s42 = scalar_lea.hbm %s1, %s41
      %s43 = sshll.u32 [#allocation5], 4
      %s44 = int_to_ptr.vmem [resolvable:$true] %s43
      %49 = dma.hbm_to_vmem [thread:$0]  %s42, 8192, %s44, [#allocation6], 256, 256, 16
    $region9: #{tpu_custom_call.1} parent=1 // pred_fallthru
      _
    // Predicated region
    $region10: #{tpu_custom_call.1} parent=1 // pred_check
      _
    $region11: #{tpu_custom_call.1} parent=1 // pred_check_branch
      %51 = sbr.rel (0) target = $region13
    $region12: #{tpu_custom_call.1} parent=1 // pred_region
      %s52 = sadd.s32 0, 0
      %s53 = smul.u32 32, %s52
      %s55 = ssub.s32 8192, 8192
      %56 = vsyncadd [#allocation6], %s55
      %s57 = smul.addr %s53, 2
      %s58 = smul.addr %s57, 128
      %s59 = scalar_lea.hbm %s2, %s58
      %s60 = sshll.u32 [#allocation7], 4
      %s61 = int_to_ptr.vmem [resolvable:$true] %s60
      %66 = dma.hbm_to_vmem [thread:$0]  %s59, 8192, %s61, [#allocation6], 256, 256, 16
    $region13: #{tpu_custom_call.1} parent=1 // pred_fallthru
      _
    // Predicated region
    $region14: #{tpu_custom_call.1} parent=1 // pred_check
      _
    $region15: #{tpu_custom_call.1} parent=1 // pred_check_branch
      %68 = sbr.rel (0) target = $region17
    $region16: #{tpu_custom_call.1} parent=1 // pred_region
      %s70 = ssub.s32 4096, 4096
      %71 = vsyncadd [#allocation9], %s70
      %s72 = sshll.u32 [#allocation8], 4
      %s73 = int_to_ptr.vmem [resolvable:$true] %s72
      %78 = dma.hbm_to_vmem [thread:$0]  %s3, 4096, %s73, [#allocation9], 128, 128, 8
    $region17: #{tpu_custom_call.1} parent=1 // pred_fallthru
      _
    // Predicated region
    $region18: #{tpu_custom_call.1} parent=1 // pred_check
      _
    $region19: #{tpu_custom_call.1} parent=1 // pred_check_branch
      %80 = sbr.rel (0) target = $region21
    $region20: #{tpu_custom_call.1} parent=1 // pred_region
      %81 = dma.done [#allocation3], 8192
    $region21: #{tpu_custom_call.1} parent=1 // pred_fallthru
      _
    // Predicated region
    $region22: #{tpu_custom_call.1} parent=1 // pred_check
      _
    $region23: #{tpu_custom_call.1} parent=1 // pred_check_branch
      %83 = sbr.rel (0) target = $region25
    $region24: #{tpu_custom_call.1} parent=1 // pred_region
      %84 = dma.done [#allocation6], 8192
    $region25: #{tpu_custom_call.1} parent=1 // pred_fallthru
      _
    // Predicated region
    $region26: #{tpu_custom_call.1} parent=1 // pred_check
      _
    $region27: #{tpu_custom_call.1} parent=1 // pred_check_branch
      %86 = sbr.rel (0) target = $region29
    $region28: #{tpu_custom_call.1} parent=1 // pred_region
      %87 = dma.done [#allocation6], 8192
    $region29: #{tpu_custom_call.1} parent=1 // pred_fallthru
      _
    // Predicated region
    $region30: #{tpu_custom_call.1} parent=1 // pred_check
      _
    $region31: #{tpu_custom_call.1} parent=1 // pred_check_branch
      %89 = sbr.rel (0) target = $region33
    $region32: #{tpu_custom_call.1} parent=1 // pred_region
      %90 = dma.done [#allocation9], 4096
    $region33: #{tpu_custom_call.1} parent=1 // pred_fallthru
      _
    %s91 = sadd.s32 0, 0
    %s92 = smul.u32 32, %s91
    %s93 = sadd.s32 0, 0
    %s94 = smul.u32 32, %s93
    %s95 = sadd.s32 0, 0
    %s96 = smul.u32 32, %s95
    %p97 = scmp.eq.s32.totalorder 0, 0
    // Predicated region
    $region34: #{tpu_custom_call.1} parent=1 // pred_check
      %p98 = pneg %p97
    $region35: #{tpu_custom_call.1} parent=1 // pred_check_branch
      %100 = sbr.rel (%p98) target = $region37
    $region36: #{tpu_custom_call.1} parent=1 // pred_region
      %101 = vst [vmem:[#allocation10] sm:$0xff] 0.0
      %102 = vst [vmem:[#allocation10 + $0x8] sm:$0xff] 0.0
      %103 = vst [vmem:[#allocation11] sm:$0xff] 0.0
    $region37: #{tpu_custom_call.1} parent=1 // pred_fallthru
      _
    %v104 = vld [vmem:[#allocation2] sm:$0xff]
    %v105 = vld [vmem:[#allocation2 + $0x8] sm:$0xff]
    %v106 = vld [vmem:[#allocation2 + $0x10] sm:$0xff]
    %v107 = vld [vmem:[#allocation2 + $0x18] sm:$0xff]
    %v108 = vld [vmem:[#allocation2 + $0x20] sm:$0xff]
    %v109 = vld [vmem:[#allocation2 + $0x28] sm:$0xff]
    %v110 = vld [vmem:[#allocation2 + $0x30] sm:$0xff]
    %v111 = vld [vmem:[#allocation2 + $0x38] sm:$0xff]
    %v112 = vld [vmem:[#allocation2 + $0x40] sm:$0xff]
    %v113 = vld [vmem:[#allocation2 + $0x48] sm:$0xff]
    %v114 = vld [vmem:[#allocation2 + $0x50] sm:$0xff]
    %v115 = vld [vmem:[#allocation2 + $0x58] sm:$0xff]
    %v116 = vld [vmem:[#allocation2 + $0x60] sm:$0xff]
    %v117 = vld [vmem:[#allocation2 + $0x68] sm:$0xff]
    %v118 = vld [vmem:[#allocation2 + $0x70] sm:$0xff]
    %v119 = vld [vmem:[#allocation2 + $0x78] sm:$0xff]
    %v120 = vld [vmem:[#allocation2 + $0x80] sm:$0xff]
    %v121 = vld [vmem:[#allocation2 + $0x88] sm:$0xff]
    %v122 = vld [vmem:[#allocation2 + $0x90] sm:$0xff]
    %v123 = vld [vmem:[#allocation2 + $0x98] sm:$0xff]
    %v124 = vld [vmem:[#allocation2 + $0xa0] sm:$0xff]
    %v125 = vld [vmem:[#allocation2 + $0xa8] sm:$0xff]
    %v126 = vld [vmem:[#allocation2 + $0xb0] sm:$0xff]
    %v127 = vld [vmem:[#allocation2 + $0xb8] sm:$0xff]
    %v128 = vld [vmem:[#allocation2 + $0xc0] sm:$0xff]
    %v129 = vld [vmem:[#allocation2 + $0xc8] sm:$0xff]
    %v130 = vld [vmem:[#allocation2 + $0xd0] sm:$0xff]
    %v131 = vld [vmem:[#allocation2 + $0xd8] sm:$0xff]
    %v132 = vld [vmem:[#allocation2 + $0xe0] sm:$0xff]
    %v133 = vld [vmem:[#allocation2 + $0xe8] sm:$0xff]
    %v134 = vld [vmem:[#allocation2 + $0xf0] sm:$0xff]
    %v135 = vld [vmem:[#allocation2 + $0xf8] sm:$0xff]
    %v136 = vld [vmem:[#allocation2 + $0x100] sm:$0xff]
    %v137 = vld [vmem:[#allocation2 + $0x108] sm:$0xff]
    %v138 = vld [vmem:[#allocation2 + $0x110] sm:$0xff]
    %v139 = vld [vmem:[#allocation2 + $0x118] sm:$0xff]
    %v140 = vld [vmem:[#allocation2 + $0x120] sm:$0xff]
    %v141 = vld [vmem:[#allocation2 + $0x128] sm:$0xff]
    %v142 = vld [vmem:[#allocation2 + $0x130] sm:$0xff]
    %v143 = vld [vmem:[#allocation2 + $0x138] sm:$0xff]
    %v144 = vld [vmem:[#allocation2 + $0x140] sm:$0xff]
    %v145 = vld [vmem:[#allocation2 + $0x148] sm:$0xff]
    %v146 = vld [vmem:[#allocation2 + $0x150] sm:$0xff]
    %v147 = vld [vmem:[#allocation2 + $0x158] sm:$0xff]
    %v148 = vld [vmem:[#allocation2 + $0x160] sm:$0xff]
    %v149 = vld [vmem:[#allocation2 + $0x168] sm:$0xff]
    %v150 = vld [vmem:[#allocation2 + $0x170] sm:$0xff]
    %v151 = vld [vmem:[#allocation2 + $0x178] sm:$0xff]
    %v152 = vld [vmem:[#allocation2 + $0x180] sm:$0xff]
    %v153 = vld [vmem:[#allocation2 + $0x188] sm:$0xff]
    %v154 = vld [vmem:[#allocation2 + $0x190] sm:$0xff]
    %v155 = vld [vmem:[#allocation2 + $0x198] sm:$0xff]
    %v156 = vld [vmem:[#allocation2 + $0x1a0] sm:$0xff]
    %v157 = vld [vmem:[#allocation2 + $0x1a8] sm:$0xff]
    %v158 = vld [vmem:[#allocation2 + $0x1b0] sm:$0xff]
    %v159 = vld [vmem:[#allocation2 + $0x1b8] sm:$0xff]
    %v160 = vld [vmem:[#allocation2 + $0x1c0] sm:$0xff]
    %v161 = vld [vmem:[#allocation2 + $0x1c8] sm:$0xff]
    %v162 = vld [vmem:[#allocation2 + $0x1d0] sm:$0xff]
    %v163 = vld [vmem:[#allocation2 + $0x1d8] sm:$0xff]
    %v164 = vld [vmem:[#allocation2 + $0x1e0] sm:$0xff]
    %v165 = vld [vmem:[#allocation2 + $0x1e8] sm:$0xff]
    %v166 = vld [vmem:[#allocation2 + $0x1f0] sm:$0xff]
    %v167 = vld [vmem:[#allocation2 + $0x1f8] sm:$0xff]
    %v168 = vld [vmem:[#allocation5] sm:$0xff]
    %v169 = vld [vmem:[#allocation5 + $0x8] sm:$0xff]
    %v170 = vld [vmem:[#allocation5 + $0x10] sm:$0xff]
    %v171 = vld [vmem:[#allocation5 + $0x18] sm:$0xff]
    %v172 = vld [vmem:[#allocation5 + $0x20] sm:$0xff]
    %v173 = vld [vmem:[#allocation5 + $0x28] sm:$0xff]
    %v174 = vld [vmem:[#allocation5 + $0x30] sm:$0xff]
    %v175 = vld [vmem:[#allocation5 + $0x38] sm:$0xff]
    %v176 = vld [vmem:[#allocation5 + $0x40] sm:$0xff]
    %v177 = vld [vmem:[#allocation5 + $0x48] sm:$0xff]
    %v178 = vld [vmem:[#allocation5 + $0x50] sm:$0xff]
    %v179 = vld [vmem:[#allocation5 + $0x58] sm:$0xff]
    %v180 = vld [vmem:[#allocation5 + $0x60] sm:$0xff]
    %v181 = vld [vmem:[#allocation5 + $0x68] sm:$0xff]
    %v182 = vld [vmem:[#allocation5 + $0x70] sm:$0xff]
    %v183 = vld [vmem:[#allocation5 + $0x78] sm:$0xff]
    %v184 = vld [vmem:[#allocation5 + $0x80] sm:$0xff]
    %v185 = vld [vmem:[#allocation5 + $0x88] sm:$0xff]
    %v186 = vld [vmem:[#allocation5 + $0x90] sm:$0xff]
    %v187 = vld [vmem:[#allocation5 + $0x98] sm:$0xff]
    %v188 = vld [vmem:[#allocation5 + $0xa0] sm:$0xff]
    %v189 = vld [vmem:[#allocation5 + $0xa8] sm:$0xff]
    %v190 = vld [vmem:[#allocation5 + $0xb0] sm:$0xff]
    %v191 = vld [vmem:[#allocation5 + $0xb8] sm:$0xff]
    %v192 = vld [vmem:[#allocation5 + $0xc0] sm:$0xff]
    %v193 = vld [vmem:[#allocation5 + $0xc8] sm:$0xff]
    %v194 = vld [vmem:[#allocation5 + $0xd0] sm:$0xff]
    %v195 = vld [vmem:[#allocation5 + $0xd8] sm:$0xff]
    %v196 = vld [vmem:[#allocation5 + $0xe0] sm:$0xff]
    %v197 = vld [vmem:[#allocation5 + $0xe8] sm:$0xff]
    %v198 = vld [vmem:[#allocation5 + $0xf0] sm:$0xff]
    %v199 = vld [vmem:[#allocation5 + $0xf8] sm:$0xff]
    %v200 = vld [vmem:[#allocation5 + $0x100] sm:$0xff]
    %v201 = vld [vmem:[#allocation5 + $0x108] sm:$0xff]
    %v202 = vld [vmem:[#allocation5 + $0x110] sm:$0xff]
    %v203 = vld [vmem:[#allocation5 + $0x118] sm:$0xff]
    %v204 = vld [vmem:[#allocation5 + $0x120] sm:$0xff]
    %v205 = vld [vmem:[#allocation5 + $0x128] sm:$0xff]
    %v206 = vld [vmem:[#allocation5 + $0x130] sm:$0xff]
    %v207 = vld [vmem:[#allocation5 + $0x138] sm:$0xff]
    %v208 = vld [vmem:[#allocation5 + $0x140] sm:$0xff]
    %v209 = vld [vmem:[#allocation5 + $0x148] sm:$0xff]
    %v210 = vld [vmem:[#allocation5 + $0x150] sm:$0xff]
    %v211 = vld [vmem:[#allocation5 + $0x158] sm:$0xff]
    %v212 = vld [vmem:[#allocation5 + $0x160] sm:$0xff]
    %v213 = vld [vmem:[#allocation5 + $0x168] sm:$0xff]
    %v214 = vld [vmem:[#allocation5 + $0x170] sm:$0xff]
    %v215 = vld [vmem:[#allocation5 + $0x178] sm:$0xff]
    %v216 = vld [vmem:[#allocation5 + $0x180] sm:$0xff]
    %v217 = vld [vmem:[#allocation5 + $0x188] sm:$0xff]
    %v218 = vld [vmem:[#allocation5 + $0x190] sm:$0xff]
    %v219 = vld [vmem:[#allocation5 + $0x198] sm:$0xff]
    %v220 = vld [vmem:[#allocation5 + $0x1a0] sm:$0xff]
    %v221 = vld [vmem:[#allocation5 + $0x1a8] sm:$0xff]
    %v222 = vld [vmem:[#allocation5 + $0x1b0] sm:$0xff]
    %v223 = vld [vmem:[#allocation5 + $0x1b8] sm:$0xff]
    %v224 = vld [vmem:[#allocation5 + $0x1c0] sm:$0xff]
    %v225 = vld [vmem:[#allocation5 + $0x1c8] sm:$0xff]
    %v226 = vld [vmem:[#allocation5 + $0x1d0] sm:$0xff]
    %v227 = vld [vmem:[#allocation5 + $0x1d8] sm:$0xff]
    %v228 = vld [vmem:[#allocation5 + $0x1e0] sm:$0xff]
    %v229 = vld [vmem:[#allocation5 + $0x1e8] sm:$0xff]
    %v230 = vld [vmem:[#allocation5 + $0x1f0] sm:$0xff]
    %v231 = vld [vmem:[#allocation5 + $0x1f8] sm:$0xff]
    %v232 = vsub.f32 %v104, %v168
    %v233 = vsub.f32 %v105, %v169
    %v234 = vsub.f32 %v106, %v170
    %v235 = vsub.f32 %v107, %v171
    %v236 = vsub.f32 %v108, %v172
    %v237 = vsub.f32 %v109, %v173
    %v238 = vsub.f32 %v110, %v174
    %v239 = vsub.f32 %v111, %v175
    %v240 = vsub.f32 %v112, %v176
    %v241 = vsub.f32 %v113, %v177
    %v242 = vsub.f32 %v114, %v178
    %v243 = vsub.f32 %v115, %v179
    %v244 = vsub.f32 %v116, %v180
    %v245 = vsub.f32 %v117, %v181
    %v246 = vsub.f32 %v118, %v182
    %v247 = vsub.f32 %v119, %v183
    %v248 = vsub.f32 %v120, %v184
    %v249 = vsub.f32 %v121, %v185
    %v250 = vsub.f32 %v122, %v186
    %v251 = vsub.f32 %v123, %v187
    %v252 = vsub.f32 %v124, %v188
    %v253 = vsub.f32 %v125, %v189
    %v254 = vsub.f32 %v126, %v190
    %v255 = vsub.f32 %v127, %v191
    %v256 = vsub.f32 %v128, %v192
    %v257 = vsub.f32 %v129, %v193
    %v258 = vsub.f32 %v130, %v194
    %v259 = vsub.f32 %v131, %v195
    %v260 = vsub.f32 %v132, %v196
    %v261 = vsub.f32 %v133, %v197
    %v262 = vsub.f32 %v134, %v198
    %v263 = vsub.f32 %v135, %v199
    %v264 = vsub.f32 %v136, %v200
    %v265 = vsub.f32 %v137, %v201
    %v266 = vsub.f32 %v138, %v202
    %v267 = vsub.f32 %v139, %v203
    %v268 = vsub.f32 %v140, %v204
    %v269 = vsub.f32 %v141, %v205
    %v270 = vsub.f32 %v142, %v206
    %v271 = vsub.f32 %v143, %v207
    %v272 = vsub.f32 %v144, %v208
    %v273 = vsub.f32 %v145, %v209
    %v274 = vsub.f32 %v146, %v210
    %v275 = vsub.f32 %v147, %v211
    %v276 = vsub.f32 %v148, %v212
    %v277 = vsub.f32 %v149, %v213
    %v278 = vsub.f32 %v150, %v214
    %v279 = vsub.f32 %v151, %v215
    %v280 = vsub.f32 %v152, %v216
    %v281 = vsub.f32 %v153, %v217
    %v282 = vsub.f32 %v154, %v218
    %v283 = vsub.f32 %v155, %v219
    %v284 = vsub.f32 %v156, %v220
    %v285 = vsub.f32 %v157, %v221
    %v286 = vsub.f32 %v158, %v222
    %v287 = vsub.f32 %v159, %v223
    %v288 = vsub.f32 %v160, %v224
    %v289 = vsub.f32 %v161, %v225
    %v290 = vsub.f32 %v162, %v226
    %v291 = vsub.f32 %v163, %v227
    %v292 = vsub.f32 %v164, %v228
    %v293 = vsub.f32 %v165, %v229
    %v294 = vsub.f32 %v166, %v230
    %v295 = vsub.f32 %v167, %v231
    %v296 = vmul.f32 %v232, %v232
    %v297 = vmul.f32 %v233, %v233
    %v298 = vmul.f32 %v234, %v234
    %v299 = vmul.f32 %v235, %v235
    %v300 = vmul.f32 %v236, %v236
    %v301 = vmul.f32 %v237, %v237
    %v302 = vmul.f32 %v238, %v238
    %v303 = vmul.f32 %v239, %v239
    %v304 = vmul.f32 %v240, %v240
    %v305 = vmul.f32 %v241, %v241
    %v306 = vmul.f32 %v242, %v242
    %v307 = vmul.f32 %v243, %v243
    %v308 = vmul.f32 %v244, %v244
    %v309 = vmul.f32 %v245, %v245
    %v310 = vmul.f32 %v246, %v246
    %v311 = vmul.f32 %v247, %v247
    %v312 = vmul.f32 %v248, %v248
    %v313 = vmul.f32 %v249, %v249
    %v314 = vmul.f32 %v250, %v250
    %v315 = vmul.f32 %v251, %v251
    %v316 = vmul.f32 %v252, %v252
    %v317 = vmul.f32 %v253, %v253
    %v318 = vmul.f32 %v254, %v254
    %v319 = vmul.f32 %v255, %v255
    %v320 = vmul.f32 %v256, %v256
    %v321 = vmul.f32 %v257, %v257
    %v322 = vmul.f32 %v258, %v258
    %v323 = vmul.f32 %v259, %v259
    %v324 = vmul.f32 %v260, %v260
    %v325 = vmul.f32 %v261, %v261
    %v326 = vmul.f32 %v262, %v262
    %v327 = vmul.f32 %v263, %v263
    %v328 = vmul.f32 %v264, %v264
    %v329 = vmul.f32 %v265, %v265
    %v330 = vmul.f32 %v266, %v266
    %v331 = vmul.f32 %v267, %v267
    %v332 = vmul.f32 %v268, %v268
    %v333 = vmul.f32 %v269, %v269
    %v334 = vmul.f32 %v270, %v270
    %v335 = vmul.f32 %v271, %v271
    %v336 = vmul.f32 %v272, %v272
    %v337 = vmul.f32 %v273, %v273
    %v338 = vmul.f32 %v274, %v274
    %v339 = vmul.f32 %v275, %v275
    %v340 = vmul.f32 %v276, %v276
    %v341 = vmul.f32 %v277, %v277
    %v342 = vmul.f32 %v278, %v278
    %v343 = vmul.f32 %v279, %v279
    %v344 = vmul.f32 %v280, %v280
    %v345 = vmul.f32 %v281, %v281
    %v346 = vmul.f32 %v282, %v282
    %v347 = vmul.f32 %v283, %v283
    %v348 = vmul.f32 %v284, %v284
    %v349 = vmul.f32 %v285, %v285
    %v350 = vmul.f32 %v286, %v286
    %v351 = vmul.f32 %v287, %v287
    %v352 = vmul.f32 %v288, %v288
    %v353 = vmul.f32 %v289, %v289
    %v354 = vmul.f32 %v290, %v290
    %v355 = vmul.f32 %v291, %v291
    %v356 = vmul.f32 %v292, %v292
    %v357 = vmul.f32 %v293, %v293
    %v358 = vmul.f32 %v294, %v294
    %v359 = vmul.f32 %v295, %v295
    %v360 = vld [vmem:[#allocation10] sm:$0xff]
    %v361 = vld [vmem:[#allocation10 + $0x8] sm:$0xff]
    %v362 = vadd.f32 %v296, %v298
    %v363 = vadd.f32 %v362, %v300
    %v364 = vadd.f32 %v363, %v302
    %v365 = vadd.f32 %v364, %v304
    %v366 = vadd.f32 %v365, %v306
    %v367 = vadd.f32 %v366, %v308
    %v368 = vadd.f32 %v367, %v310
    %v369 = vadd.f32 %v368, %v312
    %v370 = vadd.f32 %v369, %v314
    %v371 = vadd.f32 %v370, %v316
    %v372 = vadd.f32 %v371, %v318
    %v373 = vadd.f32 %v372, %v320
    %v374 = vadd.f32 %v373, %v322
    %v375 = vadd.f32 %v374, %v324
    %v376 = vadd.f32 %v375, %v326
    %v377 = vadd.f32 %v376, %v328
    %v378 = vadd.f32 %v377, %v330
    %v379 = vadd.f32 %v378, %v332
    %v380 = vadd.f32 %v379, %v334
    %v381 = vadd.f32 %v380, %v336
    %v382 = vadd.f32 %v381, %v338
    %v383 = vadd.f32 %v382, %v340
    %v384 = vadd.f32 %v383, %v342
    %v385 = vadd.f32 %v384, %v344
    %v386 = vadd.f32 %v385, %v346
    %v387 = vadd.f32 %v386, %v348
    %v388 = vadd.f32 %v387, %v350
    %v389 = vadd.f32 %v388, %v352
    %v390 = vadd.f32 %v389, %v354
    %v391 = vadd.f32 %v390, %v356
    %v392 = vadd.f32 %v391, %v358
    %v393 = vadd.f32 %v297, %v299
    %v394 = vadd.f32 %v393, %v301
    %v395 = vadd.f32 %v394, %v303
    %v396 = vadd.f32 %v395, %v305
    %v397 = vadd.f32 %v396, %v307
    %v398 = vadd.f32 %v397, %v309
    %v399 = vadd.f32 %v398, %v311
    %v400 = vadd.f32 %v399, %v313
    %v401 = vadd.f32 %v400, %v315
    %v402 = vadd.f32 %v401, %v317
    %v403 = vadd.f32 %v402, %v319
    %v404 = vadd.f32 %v403, %v321
    %v405 = vadd.f32 %v404, %v323
    %v406 = vadd.f32 %v405, %v325
    %v407 = vadd.f32 %v406, %v327
    %v408 = vadd.f32 %v407, %v329
    %v409 = vadd.f32 %v408, %v331
    %v410 = vadd.f32 %v409, %v333
    %v411 = vadd.f32 %v410, %v335
    %v412 = vadd.f32 %v411, %v337
    %v413 = vadd.f32 %v412, %v339
    %v414 = vadd.f32 %v413, %v341
    %v415 = vadd.f32 %v414, %v343
    %v416 = vadd.f32 %v415, %v345
    %v417 = vadd.f32 %v416, %v347
    %v418 = vadd.f32 %v417, %v349
    %v419 = vadd.f32 %v418, %v351
    %v420 = vadd.f32 %v419, %v353
    %v421 = vadd.f32 %v420, %v355
    %v422 = vadd.f32 %v421, %v357
    %v423 = vadd.f32 %v422, %v359
    %v424 = vadd.f32 %v360, %v392
    %v425 = vadd.f32 %v361, %v423
    %426 = vst [vmem:[#allocation10] sm:$0xff] %v424
    %427 = vst [vmem:[#allocation10 + $0x8] sm:$0xff] %v425
    %s428 = sadd.s32 0, 0
    %s429 = smul.u32 %s428, 256
    %s430 = scalar_lea.vmem [#allocation8], %s429
    %v431 = vld [vmem:[%s430] sm:$0xff]
    %v432 = vld [vmem:[%s430 + $0x8] sm:$0xff]
    %v433 = vld [vmem:[%s430 + $0x10] sm:$0xff]
    %v434 = vld [vmem:[%s430 + $0x18] sm:$0xff]
    %v435 = vld [vmem:[%s430 + $0x20] sm:$0xff]
    %v436 = vld [vmem:[%s430 + $0x28] sm:$0xff]
    %v437 = vld [vmem:[%s430 + $0x30] sm:$0xff]
    %v438 = vld [vmem:[%s430 + $0x38] sm:$0xff]
    %v439 = vld [vmem:[%s430 + $0x40] sm:$0xff]
    %v440 = vld [vmem:[%s430 + $0x48] sm:$0xff]
    %v441 = vld [vmem:[%s430 + $0x50] sm:$0xff]
    %v442 = vld [vmem:[%s430 + $0x58] sm:$0xff]
    %v443 = vld [vmem:[%s430 + $0x60] sm:$0xff]
    %v444 = vld [vmem:[%s430 + $0x68] sm:$0xff]
    %v445 = vld [vmem:[%s430 + $0x70] sm:$0xff]
    %v446 = vld [vmem:[%s430 + $0x78] sm:$0xff]
    %v447 = vld [vmem:[%s430 + $0x80] sm:$0xff]
    %v448 = vld [vmem:[%s430 + $0x88] sm:$0xff]
    %v449 = vld [vmem:[%s430 + $0x90] sm:$0xff]
    %v450 = vld [vmem:[%s430 + $0x98] sm:$0xff]
    %v451 = vld [vmem:[%s430 + $0xa0] sm:$0xff]
    %v452 = vld [vmem:[%s430 + $0xa8] sm:$0xff]
    %v453 = vld [vmem:[%s430 + $0xb0] sm:$0xff]
    %v454 = vld [vmem:[%s430 + $0xb8] sm:$0xff]
    %v455 = vld [vmem:[%s430 + $0xc0] sm:$0xff]
    %v456 = vld [vmem:[%s430 + $0xc8] sm:$0xff]
    %v457 = vld [vmem:[%s430 + $0xd0] sm:$0xff]
    %v458 = vld [vmem:[%s430 + $0xd8] sm:$0xff]
    %v459 = vld [vmem:[%s430 + $0xe0] sm:$0xff]
    %v460 = vld [vmem:[%s430 + $0xe8] sm:$0xff]
    %v461 = vld [vmem:[%s430 + $0xf0] sm:$0xff]
    %v462 = vld [vmem:[%s430 + $0xf8] sm:$0xff]
    %v463 = vld [vmem:[#allocation7] sm:$0xff]
    %v464 = vld [vmem:[#allocation7 + $0x8] sm:$0xff]
    %v465 = vld [vmem:[#allocation7 + $0x10] sm:$0xff]
    %v466 = vld [vmem:[#allocation7 + $0x18] sm:$0xff]
    %v467 = vld [vmem:[#allocation7 + $0x20] sm:$0xff]
    %v468 = vld [vmem:[#allocation7 + $0x28] sm:$0xff]
    %v469 = vld [vmem:[#allocation7 + $0x30] sm:$0xff]
    %v470 = vld [vmem:[#allocation7 + $0x38] sm:$0xff]
    %v471 = vld [vmem:[#allocation7 + $0x40] sm:$0xff]
    %v472 = vld [vmem:[#allocation7 + $0x48] sm:$0xff]
    %v473 = vld [vmem:[#allocation7 + $0x50] sm:$0xff]
    %v474 = vld [vmem:[#allocation7 + $0x58] sm:$0xff]
    %v475 = vld [vmem:[#allocation7 + $0x60] sm:$0xff]
    %v476 = vld [vmem:[#allocation7 + $0x68] sm:$0xff]
    %v477 = vld [vmem:[#allocation7 + $0x70] sm:$0xff]
    %v478 = vld [vmem:[#allocation7 + $0x78] sm:$0xff]
    %v479 = vld [vmem:[#allocation7 + $0x80] sm:$0xff]
    %v480 = vld [vmem:[#allocation7 + $0x88] sm:$0xff]
    %v481 = vld [vmem:[#allocation7 + $0x90] sm:$0xff]
    %v482 = vld [vmem:[#allocation7 + $0x98] sm:$0xff]
    %v483 = vld [vmem:[#allocation7 + $0xa0] sm:$0xff]
    %v484 = vld [vmem:[#allocation7 + $0xa8] sm:$0xff]
    %v485 = vld [vmem:[#allocation7 + $0xb0] sm:$0xff]
    %v486 = vld [vmem:[#allocation7 + $0xb8] sm:$0xff]
    %v487 = vld [vmem:[#allocation7 + $0xc0] sm:$0xff]
    %v488 = vld [vmem:[#allocation7 + $0xc8] sm:$0xff]
    %v489 = vld [vmem:[#allocation7 + $0xd0] sm:$0xff]
    %v490 = vld [vmem:[#allocation7 + $0xd8] sm:$0xff]
    %v491 = vld [vmem:[#allocation7 + $0xe0] sm:$0xff]
    %v492 = vld [vmem:[#allocation7 + $0xe8] sm:$0xff]
    %v493 = vld [vmem:[#allocation7 + $0xf0] sm:$0xff]
    %v494 = vld [vmem:[#allocation7 + $0xf8] sm:$0xff]
    %v495 = vld [vmem:[#allocation7 + $0x100] sm:$0xff]
    %v496 = vld [vmem:[#allocation7 + $0x108] sm:$0xff]
    %v497 = vld [vmem:[#allocation7 + $0x110] sm:$0xff]
    %v498 = vld [vmem:[#allocation7 + $0x118] sm:$0xff]
    %v499 = vld [vmem:[#allocation7 + $0x120] sm:$0xff]
    %v500 = vld [vmem:[#allocation7 + $0x128] sm:$0xff]
    %v501 = vld [vmem:[#allocation7 + $0x130] sm:$0xff]
    %v502 = vld [vmem:[#allocation7 + $0x138] sm:$0xff]
    %v503 = vld [vmem:[#allocation7 + $0x140] sm:$0xff]
    %v504 = vld [vmem:[#allocation7 + $0x148] sm:$0xff]
    %v505 = vld [vmem:[#allocation7 + $0x150] sm:$0xff]
    %v506 = vld [vmem:[#allocation7 + $0x158] sm:$0xff]
    %v507 = vld [vmem:[#allocation7 + $0x160] sm:$0xff]
    %v508 = vld [vmem:[#allocation7 + $0x168] sm:$0xff]
    %v509 = vld [vmem:[#allocation7 + $0x170] sm:$0xff]
    %v510 = vld [vmem:[#allocation7 + $0x178] sm:$0xff]
    %v511 = vld [vmem:[#allocation7 + $0x180] sm:$0xff]
    %v512 = vld [vmem:[#allocation7 + $0x188] sm:$0xff]
    %v513 = vld [vmem:[#allocation7 + $0x190] sm:$0xff]
    %v514 = vld [vmem:[#allocation7 + $0x198] sm:$0xff]
    %v515 = vld [vmem:[#allocation7 + $0x1a0] sm:$0xff]
    %v516 = vld [vmem:[#allocation7 + $0x1a8] sm:$0xff]
    %v517 = vld [vmem:[#allocation7 + $0x1b0] sm:$0xff]
    %v518 = vld [vmem:[#allocation7 + $0x1b8] sm:$0xff]
    %v519 = vld [vmem:[#allocation7 + $0x1c0] sm:$0xff]
    %v520 = vld [vmem:[#allocation7 + $0x1c8] sm:$0xff]
    %v521 = vld [vmem:[#allocation7 + $0x1d0] sm:$0xff]
    %v522 = vld [vmem:[#allocation7 + $0x1d8] sm:$0xff]
    %v523 = vld [vmem:[#allocation7 + $0x1e0] sm:$0xff]
    %v524 = vld [vmem:[#allocation7 + $0x1e8] sm:$0xff]
    %v525 = vld [vmem:[#allocation7 + $0x1f0] sm:$0xff]
    %v526 = vld [vmem:[#allocation7 + $0x1f8] sm:$0xff]
    %v527 = vld [vmem:[#allocation8] sm:$0xff]
    %v528 = vld [vmem:[#allocation8 + $0x8] sm:$0xff]
    %v529 = vld [vmem:[#allocation8 + $0x10] sm:$0xff]
    %v530 = vld [vmem:[#allocation8 + $0x18] sm:$0xff]
    %v531 = vld [vmem:[#allocation8 + $0x20] sm:$0xff]
    %v532 = vld [vmem:[#allocation8 + $0x28] sm:$0xff]
    %v533 = vld [vmem:[#allocation8 + $0x30] sm:$0xff]
    %v534 = vld [vmem:[#allocation8 + $0x38] sm:$0xff]
    %v535 = vld [vmem:[#allocation8 + $0x40] sm:$0xff]
    %v536 = vld [vmem:[#allocation8 + $0x48] sm:$0xff]
    %v537 = vld [vmem:[#allocation8 + $0x50] sm:$0xff]
    %v538 = vld [vmem:[#allocation8 + $0x58] sm:$0xff]
    %v539 = vld [vmem:[#allocation8 + $0x60] sm:$0xff]
    %v540 = vld [vmem:[#allocation8 + $0x68] sm:$0xff]
    %v541 = vld [vmem:[#allocation8 + $0x70] sm:$0xff]
    %v542 = vld [vmem:[#allocation8 + $0x78] sm:$0xff]
    %v543 = vld [vmem:[#allocation8 + $0x80] sm:$0xff]
    %v544 = vld [vmem:[#allocation8 + $0x88] sm:$0xff]
    %v545 = vld [vmem:[#allocation8 + $0x90] sm:$0xff]
    %v546 = vld [vmem:[#allocation8 + $0x98] sm:$0xff]
    %v547 = vld [vmem:[#allocation8 + $0xa0] sm:$0xff]
    %v548 = vld [vmem:[#allocation8 + $0xa8] sm:$0xff]
    %v549 = vld [vmem:[#allocation8 + $0xb0] sm:$0xff]
    %v550 = vld [vmem:[#allocation8 + $0xb8] sm:$0xff]
    %v551 = vld [vmem:[#allocation8 + $0xc0] sm:$0xff]
    %v552 = vld [vmem:[#allocation8 + $0xc8] sm:$0xff]
    %v553 = vld [vmem:[#allocation8 + $0xd0] sm:$0xff]
    %v554 = vld [vmem:[#allocation8 + $0xd8] sm:$0xff]
    %v555 = vld [vmem:[#allocation8 + $0xe0] sm:$0xff]
    %v556 = vld [vmem:[#allocation8 + $0xe8] sm:$0xff]
    %v557 = vld [vmem:[#allocation8 + $0xf0] sm:$0xff]
    %v558 = vld [vmem:[#allocation8 + $0xf8] sm:$0xff]
    %559 = vmatprep.subr.mxu0 0.0
    %560 = vmatpush1.msra.mxu0 %v527
    %561 = vmatprep.subr.mxu0 0.0
    %562 = vmatpush1.msra.mxu0 %v528
    %563 = vmatprep.subr.mxu0 0.0
    %564 = vmatpush1.msra.mxu0 %v529
    %565 = vmatprep.subr.mxu0 0.0
    %566 = vmatpush1.msra.mxu0 %v530
    %567 = vmatprep.subr.mxu0 0.0
    %568 = vmatpush1.msra.mxu0 %v531
    %569 = vmatprep.subr.mxu0 0.0
    %570 = vmatpush1.msra.mxu0 %v532
    %571 = vmatprep.subr.mxu0 0.0
    %572 = vmatpush1.msra.mxu0 %v533
    %573 = vmatprep.subr.mxu0 0.0
    %574 = vmatpush1.msra.mxu0 %v534
    %575 = vmatprep.subr.mxu0 0.0
    %576 = vmatpush1.msra.mxu0 %v535
    %577 = vmatprep.subr.mxu0 0.0
    %578 = vmatpush1.msra.mxu0 %v536
    %579 = vmatprep.subr.mxu0 0.0
    %580 = vmatpush1.msra.mxu0 %v537
    %581 = vmatprep.subr.mxu0 0.0
    %582 = vmatpush1.msra.mxu0 %v538
    %583 = vmatprep.subr.mxu0 0.0
    %584 = vmatpush1.msra.mxu0 %v539
    %585 = vmatprep.subr.mxu0 0.0
    %586 = vmatpush1.msra.mxu0 %v540
    %587 = vmatprep.subr.mxu0 0.0
    %588 = vmatpush1.msra.mxu0 %v541
    %589 = vmatprep.subr.mxu0 0.0
    %590 = vmatpush1.msra.mxu0 %v542
    %591 = vmatprep.subr.mxu0 0.0
    %592 = vmatpush1.msra.mxu0 %v543
    %593 = vmatprep.subr.mxu0 0.0
    %594 = vmatpush1.msra.mxu0 %v544
    %595 = vmatprep.subr.mxu0 0.0
    %596 = vmatpush1.msra.mxu0 %v545
    %597 = vmatprep.subr.mxu0 0.0
    %598 = vmatpush1.msra.mxu0 %v546
    %599 = vmatprep.subr.mxu0 0.0
    %600 = vmatpush1.msra.mxu0 %v547
    %601 = vmatprep.subr.mxu0 0.0
    %602 = vmatpush1.msra.mxu0 %v548
    %603 = vmatprep.subr.mxu0 0.0
    %604 = vmatpush1.msra.mxu0 %v549
    %605 = vmatprep.subr.mxu0 0.0
    %606 = vmatpush1.msra.mxu0 %v550
    %607 = vmatprep.subr.mxu0 0.0
    %608 = vmatpush1.msra.mxu0 %v551
    %609 = vmatprep.subr.mxu0 0.0
    %610 = vmatpush1.msra.mxu0 %v552
    %611 = vmatprep.subr.mxu0 0.0
    %612 = vmatpush1.msra.mxu0 %v553
    %613 = vmatprep.subr.mxu0 0.0
    %614 = vmatpush1.msra.mxu0 %v554
    %615 = vmatprep.subr.mxu0 0.0
    %616 = vmatpush1.msra.mxu0 %v555
    %617 = vmatprep.subr.mxu0 0.0
    %618 = vmatpush1.msra.mxu0 %v556
    %619 = vmatprep.subr.mxu0 0.0
    %620 = vmatpush1.msra.mxu0 %v557
    %621 = vmatprep.subr.mxu0 0.0
    %622 = vmatpush1.msra.mxu0 %v558
    %623 = vmatprep.mubr.f32.mxu0 %v464
    %624 = vmatmul.mubr.f32.gmra.mrb[0].mxu0 %v463
    %v625 = vpop.f32.mrb[0].mxu0
    %v626 = vadd.f32 0.0, %v625
    %v627 = vpop.f32.mrb[0].mxu0
    %628 = vmatprep.mubr.f32.mxu0 %v466
    %629 = vmatmul.mubr.f32.gmra.mrb[0].mxu0 %v465
    %v630 = vpop.f32.mrb[0].mxu0
    %v631 = vadd.f32 0.0, %v630
    %v632 = vpop.f32.mrb[0].mxu0
    %633 = vmatprep.mubr.f32.mxu0 %v468
    %634 = vmatmul.mubr.f32.gmra.mrb[0].mxu0 %v467
    %v635 = vpop.f32.mrb[0].mxu0
    %v636 = vadd.f32 0.0, %v635
    %v637 = vpop.f32.mrb[0].mxu0
    %638 = vmatprep.mubr.f32.mxu0 %v470
    %639 = vmatmul.mubr.f32.gmra.mrb[0].mxu0 %v469
    %v640 = vpop.f32.mrb[0].mxu0
    %v641 = vadd.f32 0.0, %v640
    %v642 = vpop.f32.mrb[0].mxu0
    %643 = vmatprep.mubr.f32.mxu0 %v472
    %644 = vmatmul.mubr.f32.gmra.mrb[0].mxu0 %v471
    %v645 = vpop.f32.mrb[0].mxu0
    %v646 = vadd.f32 0.0, %v645
    %v647 = vpop.f32.mrb[0].mxu0
    %648 = vmatprep.mubr.f32.mxu0 %v474
    %649 = vmatmul.mubr.f32.gmra.mrb[0].mxu0 %v473
    %v650 = vpop.f32.mrb[0].mxu0
    %v651 = vadd.f32 0.0, %v650
    %v652 = vpop.f32.mrb[0].mxu0
    %653 = vmatprep.mubr.f32.mxu0 %v476
    %654 = vmatmul.mubr.f32.gmra.mrb[0].mxu0 %v475
    %v655 = vpop.f32.mrb[0].mxu0
    %v656 = vadd.f32 0.0, %v655
    %v657 = vpop.f32.mrb[0].mxu0
    %658 = vmatprep.mubr.f32.mxu0 %v478
    %659 = vmatmul.mubr.f32.gmra.mrb[0].mxu0 %v477
    %v660 = vpop.f32.mrb[0].mxu0
    %v661 = vadd.f32 0.0, %v660
    %v662 = vpop.f32.mrb[0].mxu0
    %663 = vmatprep.mubr.f32.mxu0 %v480
    %664 = vmatmul.mubr.f32.gmra.mrb[0].mxu0 %v479
    %v665 = vpop.f32.mrb[0].mxu0
    %v666 = vadd.f32 0.0, %v665
    %v667 = vpop.f32.mrb[0].mxu0
    %668 = vmatprep.mubr.f32.mxu0 %v482
    %669 = vmatmul.mubr.f32.gmra.mrb[0].mxu0 %v481
    %v670 = vpop.f32.mrb[0].mxu0
    %v671 = vadd.f32 0.0, %v670
    %v672 = vpop.f32.mrb[0].mxu0
    %673 = vmatprep.mubr.f32.mxu0 %v484
    %674 = vmatmul.mubr.f32.gmra.mrb[0].mxu0 %v483
    %v675 = vpop.f32.mrb[0].mxu0
    %v676 = vadd.f32 0.0, %v675
    %v677 = vpop.f32.mrb[0].mxu0
    %678 = vmatprep.mubr.f32.mxu0 %v486
    %679 = vmatmul.mubr.f32.gmra.mrb[0].mxu0 %v485
    %v680 = vpop.f32.mrb[0].mxu0
    %v681 = vadd.f32 0.0, %v680
    %v682 = vpop.f32.mrb[0].mxu0
    %683 = vmatprep.mubr.f32.mxu0 %v488
    %684 = vmatmul.mubr.f32.gmra.mrb[0].mxu0 %v487
    %v685 = vpop.f32.mrb[0].mxu0
    %v686 = vadd.f32 0.0, %v685
    %v687 = vpop.f32.mrb[0].mxu0
    %688 = vmatprep.mubr.f32.mxu0 %v490
    %689 = vmatmul.mubr.f32.gmra.mrb[0].mxu0 %v489
    %v690 = vpop.f32.mrb[0].mxu0
    %v691 = vadd.f32 0.0, %v690
    %v692 = vpop.f32.mrb[0].mxu0
    %693 = vmatprep.mubr.f32.mxu0 %v492
    %694 = vmatmul.mubr.f32.gmra.mrb[0].mxu0 %v491
    %v695 = vpop.f32.mrb[0].mxu0
    %v696 = vadd.f32 0.0, %v695
    %v697 = vpop.f32.mrb[0].mxu0
    %698 = vmatprep.mubr.f32.mxu0 %v494
    %699 = vmatmul.mubr.f32.gmra.mrb[0].mxu0 %v493
    %v700 = vpop.f32.mrb[0].mxu0
    %v701 = vadd.f32 0.0, %v700
    %v702 = vpop.f32.mrb[0].mxu0
    %703 = vmatprep.mubr.f32.mxu0 %v496
    %704 = vmatmul.mubr.f32.gmra.mrb[0].mxu0 %v495
    %v705 = vpop.f32.mrb[0].mxu0
    %v706 = vadd.f32 0.0, %v705
    %v707 = vpop.f32.mrb[0].mxu0
    %708 = vmatprep.mubr.f32.mxu0 %v498
    %709 = vmatmul.mubr.f32.gmra.mrb[0].mxu0 %v497
    %v710 = vpop.f32.mrb[0].mxu0
    %v711 = vadd.f32 0.0, %v710
    %v712 = vpop.f32.mrb[0].mxu0
    %713 = vmatprep.mubr.f32.mxu0 %v500
    %714 = vmatmul.mubr.f32.gmra.mrb[0].mxu0 %v499
    %v715 = vpop.f32.mrb[0].mxu0
    %v716 = vadd.f32 0.0, %v715
    %v717 = vpop.f32.mrb[0].mxu0
    %718 = vmatprep.mubr.f32.mxu0 %v502
    %719 = vmatmul.mubr.f32.gmra.mrb[0].mxu0 %v501
    %v720 = vpop.f32.mrb[0].mxu0
    %v721 = vadd.f32 0.0, %v720
    %v722 = vpop.f32.mrb[0].mxu0
    %723 = vmatprep.mubr.f32.mxu0 %v504
    %724 = vmatmul.mubr.f32.gmra.mrb[0].mxu0 %v503
    %v725 = vpop.f32.mrb[0].mxu0
    %v726 = vadd.f32 0.0, %v725
    %v727 = vpop.f32.mrb[0].mxu0
    %728 = vmatprep.mubr.f32.mxu0 %v506
    %729 = vmatmul.mubr.f32.gmra.mrb[0].mxu0 %v505
    %v730 = vpop.f32.mrb[0].mxu0
    %v731 = vadd.f32 0.0, %v730
    %v732 = vpop.f32.mrb[0].mxu0
    %733 = vmatprep.mubr.f32.mxu0 %v508
    %734 = vmatmul.mubr.f32.gmra.mrb[0].mxu0 %v507
    %v735 = vpop.f32.mrb[0].mxu0
    %v736 = vadd.f32 0.0, %v735
    %v737 = vpop.f32.mrb[0].mxu0
    %738 = vmatprep.mubr.f32.mxu0 %v510
    %739 = vmatmul.mubr.f32.gmra.mrb[0].mxu0 %v509
    %v740 = vpop.f32.mrb[0].mxu0
    %v741 = vadd.f32 0.0, %v740
    %v742 = vpop.f32.mrb[0].mxu0
    %743 = vmatprep.mubr.f32.mxu0 %v512
    %744 = vmatmul.mubr.f32.gmra.mrb[0].mxu0 %v511
    %v745 = vpop.f32.mrb[0].mxu0
    %v746 = vadd.f32 0.0, %v745
    %v747 = vpop.f32.mrb[0].mxu0
    %748 = vmatprep.mubr.f32.mxu0 %v514
    %749 = vmatmul.mubr.f32.gmra.mrb[0].mxu0 %v513
    %v750 = vpop.f32.mrb[0].mxu0
    %v751 = vadd.f32 0.0, %v750
    %v752 = vpop.f32.mrb[0].mxu0
    %753 = vmatprep.mubr.f32.mxu0 %v516
    %754 = vmatmul.mubr.f32.gmra.mrb[0].mxu0 %v515
    %v755 = vpop.f32.mrb[0].mxu0
    %v756 = vadd.f32 0.0, %v755
    %v757 = vpop.f32.mrb[0].mxu0
    %758 = vmatprep.mubr.f32.mxu0 %v518
    %759 = vmatmul.mubr.f32.gmra.mrb[0].mxu0 %v517
    %v760 = vpop.f32.mrb[0].mxu0
    %v761 = vadd.f32 0.0, %v760
    %v762 = vpop.f32.mrb[0].mxu0
    %763 = vmatprep.mubr.f32.mxu0 %v520
    %764 = vmatmul.mubr.f32.gmra.mrb[0].mxu0 %v519
    %v765 = vpop.f32.mrb[0].mxu0
    %v766 = vadd.f32 0.0, %v765
    %v767 = vpop.f32.mrb[0].mxu0
    %768 = vmatprep.mubr.f32.mxu0 %v522
    %769 = vmatmul.mubr.f32.gmra.mrb[0].mxu0 %v521
    %v770 = vpop.f32.mrb[0].mxu0
    %v771 = vadd.f32 0.0, %v770
    %v772 = vpop.f32.mrb[0].mxu0
    %773 = vmatprep.mubr.f32.mxu0 %v524
    %774 = vmatmul.mubr.f32.gmra.mrb[0].mxu0 %v523
    %v775 = vpop.f32.mrb[0].mxu0
    %v776 = vadd.f32 0.0, %v775
    %v777 = vpop.f32.mrb[0].mxu0
    %778 = vmatprep.mubr.f32.mxu0 %v526
    %779 = vmatmul.mubr.f32.gmra.mrb[0].mxu0 %v525
    %v780 = vpop.f32.mrb[0].mxu0
    %v781 = vadd.f32 0.0, %v780
    %v782 = vpop.f32.mrb[0].mxu0
    %783 = vdwg.mxu0
    %v784 = vmul.f32 %v431, %v626
    %v785 = vmul.f32 %v432, %v631
    %v786 = vmul.f32 %v433, %v636
    %v787 = vmul.f32 %v434, %v641
    %v788 = vmul.f32 %v435, %v646
    %v789 = vmul.f32 %v436, %v651
    %v790 = vmul.f32 %v437, %v656
    %v791 = vmul.f32 %v438, %v661
    %v792 = vmul.f32 %v439, %v666
    %v793 = vmul.f32 %v440, %v671
    %v794 = vmul.f32 %v441, %v676
    %v795 = vmul.f32 %v442, %v681
    %v796 = vmul.f32 %v443, %v686
    %v797 = vmul.f32 %v444, %v691
    %v798 = vmul.f32 %v445, %v696
    %v799 = vmul.f32 %v446, %v701
    %v800 = vmul.f32 %v447, %v706
    %v801 = vmul.f32 %v448, %v711
    %v802 = vmul.f32 %v449, %v716
    %v803 = vmul.f32 %v450, %v721
    %v804 = vmul.f32 %v451, %v726
    %v805 = vmul.f32 %v452, %v731
    %v806 = vmul.f32 %v453, %v736
    %v807 = vmul.f32 %v454, %v741
    %v808 = vmul.f32 %v455, %v746
    %v809 = vmul.f32 %v456, %v751
    %v810 = vmul.f32 %v457, %v756
    %v811 = vmul.f32 %v458, %v761
    %v812 = vmul.f32 %v459, %v766
    %v813 = vmul.f32 %v460, %v771
    %v814 = vmul.f32 %v461, %v776
    %v815 = vmul.f32 %v462, %v781
    %v816 = vld [vmem:[#allocation11] sm:$0xff]
    %v817 = vadd.f32 %v784, %v785
    %v818 = vadd.f32 %v817, %v786
    %v819 = vadd.f32 %v818, %v787
    %v820 = vadd.f32 %v819, %v788
    %v821 = vadd.f32 %v820, %v789
    %v822 = vadd.f32 %v821, %v790
    %v823 = vadd.f32 %v822, %v791
    %v824 = vadd.f32 %v823, %v792
    %v825 = vadd.f32 %v824, %v793
    %v826 = vadd.f32 %v825, %v794
    %v827 = vadd.f32 %v826, %v795
    %v828 = vadd.f32 %v827, %v796
    %v829 = vadd.f32 %v828, %v797
    %v830 = vadd.f32 %v829, %v798
    %v831 = vadd.f32 %v830, %v799
    %v832 = vadd.f32 %v831, %v800
    %v833 = vadd.f32 %v832, %v801
    %v834 = vadd.f32 %v833, %v802
    %v835 = vadd.f32 %v834, %v803
    %v836 = vadd.f32 %v835, %v804
    %v837 = vadd.f32 %v836, %v805
    %v838 = vadd.f32 %v837, %v806
    %v839 = vadd.f32 %v838, %v807
    %v840 = vadd.f32 %v839, %v808
    %v841 = vadd.f32 %v840, %v809
    %v842 = vadd.f32 %v841, %v810
    %v843 = vadd.f32 %v842, %v811
    %v844 = vadd.f32 %v843, %v812
    %v845 = vadd.f32 %v844, %v813
    %v846 = vadd.f32 %v845, %v814
    %v847 = vadd.f32 %v846, %v815
    %v848 = vadd.f32 %v816, %v847
    %849 = vst [vmem:[#allocation11] sm:$0xff] %v848
    // Predicated region
    $region38: #{tpu_custom_call.1} parent=1 // pred_check
      _
    $region39: #{tpu_custom_call.1} parent=1 // pred_check_branch
      %851 = sbr.rel (0) target = $region41
    $region40: #{tpu_custom_call.1} parent=1 // pred_region
      %s853 = ssub.s32 256, 256
      %854 = vsyncadd [#allocation4], %s853
      %s856 = sshll.u32 [#allocation10], 4
      %s857 = int_to_ptr.vmem [resolvable:$true] %s856
      %859 = dma.vmem_to_hbm [thread:$0]  %s857, 256, %s4, [#allocation4]
    $region41: #{tpu_custom_call.1} parent=1 // pred_fallthru
      _
    // Predicated region
    $region42: #{tpu_custom_call.1} parent=1 // pred_check
      _
    $region43: #{tpu_custom_call.1} parent=1 // pred_check_branch
      %861 = sbr.rel (0) target = $region45
    $region44: #{tpu_custom_call.1} parent=1 // pred_region
      %s863 = ssub.s32 128, 128
      %864 = vsyncadd [#allocation12], %s863
      %s866 = sshll.u32 [#allocation11], 4
      %s867 = int_to_ptr.vmem [resolvable:$true] %s866
      %869 = dma.vmem_to_hbm [thread:$0]  %s867, 128, %s5, [#allocation12]
    $region45: #{tpu_custom_call.1} parent=1 // pred_fallthru
      _
    // Predicated region
    $region46: #{tpu_custom_call.1} parent=1 // pred_check
      _
    $region47: #{tpu_custom_call.1} parent=1 // pred_check_branch
      %871 = sbr.rel (0) target = $region49
    $region48: #{tpu_custom_call.1} parent=1 // pred_region
      %872 = dma.done [#allocation4], 256
    $region49: #{tpu_custom_call.1} parent=1 // pred_fallthru
      _
    // Predicated region
    $region50: #{tpu_custom_call.1} parent=1 // pred_check
      _
    $region51: #{tpu_custom_call.1} parent=1 // pred_check_branch
      %874 = sbr.rel (0) target = $region53
    $region52: #{tpu_custom_call.1} parent=1 // pred_region
      %875 = dma.done [#allocation12], 128
    $region53: #{tpu_custom_call.1} parent=1 // pred_fallthru
      _
    %876 = vsyncpa [#allocation3], 1
    %877 = vsyncpa [#allocation6], 1
    %878 = vsyncpa [#allocation9], 1
    %879 = vsyncpa [#allocation4], 1
    %880 = vsyncpa [#allocation12], 1

</llo_original>
